<compile_context>
chip_gen: v7x
topology: tpu7x:2x2x1
jax: 0.10.0
libtpu: 0.0.40
codegen_flags: <defaults>
</compile_context>

<pallas_src>
import math

import jax
import jax.numpy as jnp
from jax import lax
from jax.experimental import pallas as pl
from jax.experimental.pallas import tpu as pltpu


# ---------------------------------------------------------------------------
# Pallas kernel 1: pairwise axis-aligned 3D GIoU + L1 center distance.
#   pred_ref: (BE, Qt, 10) = [pmin(3) | pmax(3) | pcen(3) | pvol(1)]   (channels on lanes)
#   gt_ref:   (BE, 10, G)  = [gmin(3) | gmax(3) | gcen(3) | gvol(1)]   (channels on sublanes)
#   out_ref:  (BE, Qt, 2G) = [cdist(G) | giou(G)]  packed lane-dense, single store
# ---------------------------------------------------------------------------
def _pairwise_kernel(pred_ref, gt_ref, out_ref):
    pred = pred_ref[...]
    gt = gt_ref[...]

    inter = None
    enc = None
    cdist = None
    for d in range(3):
        pmn = pred[:, :, d:d + 1]          # (BE, Qt, 1)
        pmx = pred[:, :, 3 + d:4 + d]
        pcn = pred[:, :, 6 + d:7 + d]
        gmn = gt[:, d:d + 1, :]            # (BE, 1, G)
        gmx = gt[:, 3 + d:4 + d, :]
        gcn = gt[:, 6 + d:7 + d, :]
        ilen = jnp.maximum(jnp.minimum(pmx, gmx) - jnp.maximum(pmn, gmn), 0.0)   # (BE, Qt, G)
        elen = jnp.maximum(pmx, gmx) - jnp.minimum(pmn, gmn)                     # (BE, Qt, G)
        cd = jnp.abs(pcn - gcn)                                                  # (BE, Qt, G)
        inter = ilen if d == 0 else inter * ilen
        enc = elen if d == 0 else enc * elen
        cdist = cd if d == 0 else cdist + cd

    pvol = pred[:, :, 9:10]                # (BE, Qt, 1)  precomputed in glue
    gvol = gt[:, 9:10, :]                  # (BE, 1, G)   precomputed in glue
    union = pvol + gvol - inter
    iou = inter / jnp.maximum(union, 1e-8)
    giou = iou - (enc - union) / jnp.maximum(enc, 1e-8)

    out_ref[...] = jnp.concatenate([cdist, giou], axis=-1)


def _pick_q_tile(batch, n_q, n_g, budget_bytes=2 << 20):
    # Largest Qt dividing Q (Qt == Q or Qt % 8 == 0) whose output block fits the budget,
    # to keep the per-step live set small at production sizes (Q=256, G=64).
    cands = [q for q in range(1, n_q + 1)
             if n_q % q == 0 and (q == n_q or q % 8 == 0)]
    fits = [q for q in cands if batch * q * 2 * n_g * 4 <= budget_bytes]
    return max(fits) if fits else min(cands)


def pairwise_giou_cdist(box_corners, gt_box_corners, center_norm, gt_center_norm, nactual_gt):
    BE, Q = box_corners.shape[:2]
    G = gt_box_corners.shape[1]

    # corner -> axis-aligned min/max and box volumes (tiny reductions, done in glue)
    pmin = box_corners.min(axis=2).astype(jnp.float32)                 # (BE, Q, 3)
    pmax = box_corners.max(axis=2).astype(jnp.float32)
    pvol = jnp.prod(pmax - pmin, axis=-1, keepdims=True)               # (BE, Q, 1)
    pred_slab = jnp.concatenate(
        [pmin, pmax, center_norm.astype(jnp.float32), pvol], axis=-1)  # (BE, Q, 10)

    gmin = gt_box_corners.min(axis=2).astype(jnp.float32)              # (BE, G, 3)
    gmax = gt_box_corners.max(axis=2).astype(jnp.float32)
    gvol = jnp.prod(gmax - gmin, axis=-1, keepdims=True)               # (BE, G, 1)
    gt_slab = jnp.concatenate(
        [gmin, gmax, gt_center_norm.astype(jnp.float32), gvol], axis=-1)   # (BE, G, 10)
    gt_slab = gt_slab.transpose(0, 2, 1)                               # (BE, 10, G)

    qt = _pick_q_tile(BE, Q, G)
    packed = pl.pallas_call(
        _pairwise_kernel,
        out_shape=jax.ShapeDtypeStruct((BE, Q, 2 * G), jnp.float32),
        grid=(Q // qt,),
        in_specs=[pl.BlockSpec((BE, qt, 10), lambda q: (0, q, 0)),
                  pl.BlockSpec((BE, 10, G), lambda q: (0, 0, 0))],
        out_specs=pl.BlockSpec((BE, qt, 2 * G), lambda q: (0, q, 0)),
        compiler_params=pltpu.CompilerParams(dimension_semantics=("parallel",)),
    )(pred_slab, gt_slab)

    cdist = packed[..., :G]
    gious = packed[..., G:]
    # Invalid GT columns -> giou 0 (matches the reference generalized_box3d_iou masking).
    g_idx = jnp.arange(G, dtype=jnp.int32)[None, None, :]
    gious = jnp.where(g_idx < nactual_gt[:, None, None], gious, 0.0)
    return cdist, gious


# ---------------------------------------------------------------------------
# Pallas kernel 2: masked loss reductions, one grid step per decoder layer.
#   logits_ref / resid_ref: (1, N, A) VMEM     (N = B*Q rows of that layer)
#   small_ref:              (1, N, 16) VMEM packed as
#       [label, gt_resid, center_g, gioud_g, mask, size_pred(3), gt_size(3), pad(5)]
#   out_ref:                (1, 8) SMEM  ->  [ce, huber, center, size, giou, 0, 0, 0]
# ---------------------------------------------------------------------------
def _loss_kernel(logits_ref, resid_ref, small_ref, out_ref):
    logits = logits_ref[0]                   # (N, A)
    resid = resid_ref[0]                     # (N, A)
    small = small_ref[0]                     # (N, 16)

    labels = small[:, 0:1].astype(jnp.int32)     # (N, 1)
    gt_resid = small[:, 1:2]
    center_g = small[:, 2:3]
    gioud_g = small[:, 3:4]
    mask = small[:, 4:5]
    size_pred = small[:, 5:8]
    gt_size = small[:, 8:11]

    one_hot = (lax.broadcasted_iota(jnp.int32, logits.shape, 1) == labels).astype(jnp.float32)

    # cross entropy over angle bins (reduction='none' per proposal)
    m = jnp.max(logits, axis=-1, keepdims=True)
    lse = m + jnp.log(jnp.sum(jnp.exp(logits - m), axis=-1, keepdims=True))
    ce = lse - jnp.sum(logits * one_hot, axis=-1, keepdims=True)              # (N, 1)

    # huber loss (delta=1.0) on the gt-class angle residual
    resid_gt = jnp.sum(resid * one_hot, axis=-1, keepdims=True)               # (N, 1)
    err = jnp.abs(resid_gt - gt_resid)
    quad = jnp.minimum(err, 1.0)
    huber = 0.5 * quad * quad + (err - quad)

    # L1 size loss summed over xyz
    size_l1 = jnp.sum(jnp.abs(size_pred - gt_size), axis=-1, keepdims=True)

    out_ref[0, 0] = jnp.sum(ce * mask)
    out_ref[0, 1] = jnp.sum(huber * mask)
    out_ref[0, 2] = jnp.sum(center_g * mask)
    out_ref[0, 3] = jnp.sum(size_l1 * mask)
    out_ref[0, 4] = jnp.sum(gioud_g * mask)
    out_ref[0, 5] = jnp.float32(0.0)
    out_ref[0, 6] = jnp.float32(0.0)
    out_ref[0, 7] = jnp.float32(0.0)


def masked_loss_sums(angle_logits, angle_resid, small_slab):
    # shapes: (L, N, A), (L, N, A), (L, N, 16)
    L, N, A = angle_logits.shape
    out = pl.pallas_call(
        _loss_kernel,
        out_shape=jax.ShapeDtypeStruct((L, 8), jnp.float32),
        grid=(L,),
        in_specs=[pl.BlockSpec((1, N, A), lambda l: (l, 0, 0)),
                  pl.BlockSpec((1, N, A), lambda l: (l, 0, 0)),
                  pl.BlockSpec((1, N, 16), lambda l: (l, 0, 0))],
        out_specs=pl.BlockSpec((1, 8), lambda l: (l, 0),
                               memory_space=pltpu.MemorySpace.SMEM),
        # each layer writes a disjoint output row -> safe to shard across v7x cores
        compiler_params=pltpu.CompilerParams(dimension_semantics=("parallel",)),
    )(angle_logits, angle_resid, small_slab)
    return out[:, :5]                       # (L, 5)


# ---------------------------------------------------------------------------
# Glue: matcher + loss assembly (mirrors SetCriterion semantics)
# ---------------------------------------------------------------------------
def greedy_matcher(cost, nactual_gt):
    # TODO(synk): reference matcher uses Hungarian assignment (scipy linear_sum_assignment);
    # replaced here with a deterministic greedy assignment over the same cost matrix.
    BE, Q, G = cost.shape
    big = jnp.asarray(1e9, cost.dtype)
    inds = jnp.zeros((BE, Q), jnp.int32)
    mask = jnp.zeros((BE, Q), jnp.float32)
    assigned = jnp.zeros((BE, Q), bool)
    for g in range(G):
        valid = (g < nactual_gt)[:, None]                 # (BE, 1)
        col = jnp.where(assigned, big, cost[:, :, g])     # (BE, Q)
        prop = jnp.argmin(col, axis=1)                    # (BE,)
        sel = (jax.nn.one_hot(prop, Q, dtype=jnp.float32) > 0) & valid
        inds = jnp.where(sel, g, inds)
        mask = jnp.where(sel, 1.0, mask)
        assigned = assigned | sel
    return {'per_prop_gt_inds': inds, 'proposal_matched_mask': mask}


def _compute_losses(outputs_list, targets, loss_weight_dict, num_angle_bin):
    nactual_gt = targets['nactual_gt']           # (B,)
    num_boxes = targets['num_boxes']
    num_boxes_replica = targets['num_boxes_replica']

    L = len(outputs_list)
    B, Q = outputs_list[0]['box_corners'].shape[:2]
    G = targets['gt_box_corners'].shape[1]
    BE = L * B                                   # effective batch: layers folded into batch

    def stack(key):
        x = jnp.stack([o[key] for o in outputs_list], axis=0)
        return jnp.reshape(x, (BE,) + x.shape[2:])

    box_corners = stack('box_corners')
    center_norm = stack('center_normalized')
    size_norm = stack('size_normalized').astype(jnp.float32)
    angle_logits = stack('angle_logits').astype(jnp.float32)
    angle_resid = stack('angle_residual_normalized').astype(jnp.float32)

    def tile_gt(x):
        return jnp.reshape(jnp.broadcast_to(x[None], (L,) + x.shape), (BE,) + x.shape[1:])

    gt_corners = tile_gt(targets['gt_box_corners'])
    gt_centers = tile_gt(targets['gt_box_centers_normalized'])
    gt_sizes = tile_gt(targets['gt_box_sizes_normalized']).astype(jnp.float32)
    gt_angle_cls = tile_gt(targets['gt_angle_class_label'])
    gt_angle_res = tile_gt(targets['gt_angle_residual_label'])
    nactual_eff = tile_gt(nactual_gt)            # (BE,)

    # TODO(synk): rotated-box GIoU (exact polytope intersection) not implemented;
    # axis-aligned corner-based GIoU is used (matches the non-rotated reference path).
    center_dist, gious = pairwise_giou_cdist(
        box_corners, gt_corners, center_norm, gt_centers, nactual_eff)

    assignments = greedy_matcher(center_dist + (1.0 - gious), nactual_eff)
    inds = assignments['per_prop_gt_inds']                     # (BE, Q)
    mask = assignments['proposal_matched_mask']                # (BE, Q)

    # torch.gather equivalents (glue)
    gt_label_g = jnp.take_along_axis(gt_angle_cls, inds, axis=1).astype(jnp.float32)
    gt_resid_norm = gt_angle_res / (math.pi / num_angle_bin)
    gt_resid_g = jnp.take_along_axis(gt_resid_norm, inds, axis=1).astype(jnp.float32)
    gt_size_g = jnp.take_along_axis(gt_sizes, inds[:, :, None], axis=1)
    center_g = jnp.take_along_axis(center_dist, inds[:, :, None], axis=2)[..., 0]
    gioud_g = jnp.take_along_axis(1.0 - gious, inds[:, :, None], axis=2)[..., 0]

    # Pack the nine per-proposal inputs into one 16-channel slab (fewer, wider DMAs).
    small_slab = jnp.concatenate(
        [gt_label_g[..., None], gt_resid_g[..., None], center_g[..., None],
         gioud_g[..., None], mask[..., None], size_norm, gt_size_g,
         jnp.zeros((BE, Q, 5), jnp.float32)], axis=-1)          # (BE, Q, 16)

    N = B * Q
    sums = masked_loss_sums(angle_logits.reshape(L, N, -1),
                            angle_resid.reshape(L, N, -1),
                            small_slab.reshape(L, N, 16))       # (L, 5)

    has_boxes = (num_boxes_replica > 0).astype(jnp.float32)

    def assemble(row):
        losses = {
            'loss_angle_cls': has_boxes * row[0] / num_boxes,
            'loss_angle_reg': has_boxes * row[1] / num_boxes,
            'loss_center':    has_boxes * row[2] / num_boxes,
            'loss_size':      has_boxes * row[3] / num_boxes,
            'loss_giou':      row[4] / num_boxes,
        }
        final = jnp.asarray(0.0, jnp.float32)
        for k, w in loss_weight_dict.items():
            if w > 0:
                name = k.replace('_weight', '')
                losses[name] = losses[name] * w
                final = final + losses[name]
        return final, losses

    total, loss_dict = assemble(sums[0])
    for k in range(1, L):
        lk, dk = assemble(sums[k])
        total = total + lk
        for key in dk:
            loss_dict[f'{key}_{k - 1}'] = dk[key]
    return total, loss_dict


def set_criterion_forward(outputs, targets, loss_weight_dict, num_angle_bin):
    nactual_gt = targets['gt_box_present'].sum(axis=1).astype(jnp.int32)
    num_boxes_replica = nactual_gt.sum()
    # TODO(synk): all_reduce_average over data-parallel replicas omitted (single device).
    num_boxes = jnp.maximum(num_boxes_replica.astype(jnp.float32), 1.0)

    targets = dict(targets)
    targets['nactual_gt'] = nactual_gt
    targets['num_boxes'] = num_boxes
    targets['num_boxes_replica'] = num_boxes_replica

    # Main + aux decoder layers stacked into one effective batch: every Pallas kernel
    # launches exactly once per forward pass.
    outputs_list = [outputs['outputs']] + list(outputs.get('aux_outputs', []))
    return _compute_losses(outputs_list, targets, loss_weight_dict, num_angle_bin)


# ---------------------------------------------------------------------------
if __name__ == "__main__":
    B, Q, G, A = 2, 16, 8, 12   # batch, proposals, max GT boxes, angle bins
    key = jax.random.PRNGKey(0)
    ks = jax.random.split(key, 16)

    def make_corners(centers, sizes):
        signs = jnp.array([[sx, sy, sz]
                           for sx in (-1., 1.) for sy in (-1., 1.) for sz in (-1., 1.)],
                          dtype=jnp.float32)                       # (8, 3)
        return centers[..., None, :] + 0.5 * sizes[..., None, :] * signs

    def make_layer(k0, k1, k2, k3):
        center_norm = jax.random.uniform(k0, (B, Q, 3))
        size_norm = jax.random.uniform(k1, (B, Q, 3), minval=0.05, maxval=0.4)
        return {
            'angle_logits': jax.random.normal(k2, (B, Q, A)),
            'angle_residual_normalized': 0.1 * jax.random.normal(k3, (B, Q, A)),
            'center_normalized': center_norm,
            'size_normalized': size_norm,
            'box_corners': make_corners(center_norm, size_norm),
        }

    outputs_main = make_layer(ks[0], ks[1], ks[2], ks[3])
    outputs_aux0 = make_layer(ks[4], ks[5], ks[6], ks[7])   # one aux decoder layer

    gt_center = jax.random.uniform(ks[8], (B, G, 3))
    gt_size = jax.random.uniform(ks[9], (B, G, 3), minval=0.05, maxval=0.4)
    gt_present = jnp.array([[1.] * 5 + [0.] * 3,
                            [1.] * 3 + [0.] * 5], dtype=jnp.float32)
    targets = {
        'gt_box_present': gt_present,
        'gt_box_centers_normalized': gt_center,
        'gt_box_sizes_normalized': gt_size,
        'gt_box_corners': make_corners(gt_center, gt_size),
        'gt_angle_class_label': jax.random.randint(ks[10], (B, G), 0, A),
        'gt_angle_residual_label': 0.1 * jax.random.normal(ks[11], (B, G)),
        'gt_box_angles': jnp.zeros((B, G)),
    }

    loss_weight_dict = {
        'loss_angle_cls_weight': 0.1,
        'loss_angle_reg_weight': 0.5,
        'loss_center_weight': 5.0,
        'loss_size_weight': 1.0,
        'loss_giou_weight': 0.25,
    }

    loss, loss_dict = set_criterion_forward(
        {'outputs': outputs_main, 'aux_outputs': [outputs_aux0]},
        targets, loss_weight_dict, num_angle_bin=A)
    jax.block_until_ready(loss)
    print("KERNEL_OK")
</pallas_src>

<mosaic_0001>
module attributes {stable_mosaic.version = 11 : i64} {
  func.func @_pairwise_kernel(%arg0: i32, %arg1: memref<4x16x10xf32, #tpu.memory_space<vmem>>, %arg2: memref<4x10x8xf32, #tpu.memory_space<vmem>>, %arg3: memref<4x16x16xf32, #tpu.memory_space<vmem>>) attributes {dimension_semantics = [#tpu.dimension_semantics<parallel>], iteration_bounds = array<i64: 1>, scalar_prefetch = 0 : i64, scratch_operands = 0 : i64, tpu.core_type = #tpu.core_type<tc>, window_params = [{transform_indices = @transform_0, window_bounds = array<i64: 4, 16, 10>}, {pipeline_mode = #tpu.pipeline_mode<synchronous>, transform_indices = @transform_1, window_bounds = array<i64: 4, 10, 8>}, {transform_indices = @transform_2, window_bounds = array<i64: 4, 16, 16>}]} {
    %c0 = arith.constant 0 : index
    %c0_0 = arith.constant 0 : index
    %c0_1 = arith.constant 0 : index
    %0 = vector.load %arg1[%c0, %c0_0, %c0_1] : memref<4x16x10xf32, #tpu.memory_space<vmem>>, vector<4x16x10xf32>
    %c0_2 = arith.constant 0 : index
    %c0_3 = arith.constant 0 : index
    %c0_4 = arith.constant 0 : index
    %1 = vector.load %arg2[%c0_2, %c0_3, %c0_4] : memref<4x10x8xf32, #tpu.memory_space<vmem>>, vector<4x10x8xf32>
    %2 = vector.extract_strided_slice %0 {offsets = [0, 0, 0], sizes = [4, 16, 1], strides = [1, 1, 1]} : vector<4x16x10xf32> to vector<4x16x1xf32>
    %3 = vector.extract_strided_slice %0 {offsets = [0, 0, 3], sizes = [4, 16, 1], strides = [1, 1, 1]} : vector<4x16x10xf32> to vector<4x16x1xf32>
    %4 = vector.extract_strided_slice %0 {offsets = [0, 0, 6], sizes = [4, 16, 1], strides = [1, 1, 1]} : vector<4x16x10xf32> to vector<4x16x1xf32>
    %5 = vector.extract_strided_slice %1 {offsets = [0, 0, 0], sizes = [4, 1, 8], strides = [1, 1, 1]} : vector<4x10x8xf32> to vector<4x1x8xf32>
    %6 = vector.extract_strided_slice %1 {offsets = [0, 3, 0], sizes = [4, 1, 8], strides = [1, 1, 1]} : vector<4x10x8xf32> to vector<4x1x8xf32>
    %7 = vector.extract_strided_slice %1 {offsets = [0, 6, 0], sizes = [4, 1, 8], strides = [1, 1, 1]} : vector<4x10x8xf32> to vector<4x1x8xf32>
    %8 = vector.broadcast %3 : vector<4x16x1xf32> to vector<4x16x8xf32>
    %9 = vector.broadcast %6 : vector<4x1x8xf32> to vector<4x16x8xf32>
    %10 = arith.minimumf %8, %9 : vector<4x16x8xf32>
    %11 = vector.broadcast %2 : vector<4x16x1xf32> to vector<4x16x8xf32>
    %12 = vector.broadcast %5 : vector<4x1x8xf32> to vector<4x16x8xf32>
    %13 = arith.maximumf %11, %12 : vector<4x16x8xf32>
    %14 = arith.subf %10, %13 : vector<4x16x8xf32>
    %cst = arith.constant 0.000000e+00 : f32
    %15 = vector.broadcast %cst : f32 to vector<4x16x8xf32>
    %16 = arith.maximumf %14, %15 : vector<4x16x8xf32>
    %17 = vector.broadcast %3 : vector<4x16x1xf32> to vector<4x16x8xf32>
    %18 = vector.broadcast %6 : vector<4x1x8xf32> to vector<4x16x8xf32>
    %19 = arith.maximumf %17, %18 : vector<4x16x8xf32>
    %20 = vector.broadcast %2 : vector<4x16x1xf32> to vector<4x16x8xf32>
    %21 = vector.broadcast %5 : vector<4x1x8xf32> to vector<4x16x8xf32>
    %22 = arith.minimumf %20, %21 : vector<4x16x8xf32>
    %23 = arith.subf %19, %22 : vector<4x16x8xf32>
    %24 = vector.broadcast %4 : vector<4x16x1xf32> to vector<4x16x8xf32>
    %25 = vector.broadcast %7 : vector<4x1x8xf32> to vector<4x16x8xf32>
    %26 = arith.subf %24, %25 : vector<4x16x8xf32>
    %27 = math.absf %26 : vector<4x16x8xf32>
    %28 = vector.extract_strided_slice %0 {offsets = [0, 0, 1], sizes = [4, 16, 1], strides = [1, 1, 1]} : vector<4x16x10xf32> to vector<4x16x1xf32>
    %29 = vector.extract_strided_slice %0 {offsets = [0, 0, 4], sizes = [4, 16, 1], strides = [1, 1, 1]} : vector<4x16x10xf32> to vector<4x16x1xf32>
    %30 = vector.extract_strided_slice %0 {offsets = [0, 0, 7], sizes = [4, 16, 1], strides = [1, 1, 1]} : vector<4x16x10xf32> to vector<4x16x1xf32>
    %31 = vector.extract_strided_slice %1 {offsets = [0, 1, 0], sizes = [4, 1, 8], strides = [1, 1, 1]} : vector<4x10x8xf32> to vector<4x1x8xf32>
    %32 = vector.extract_strided_slice %1 {offsets = [0, 4, 0], sizes = [4, 1, 8], strides = [1, 1, 1]} : vector<4x10x8xf32> to vector<4x1x8xf32>
    %33 = vector.extract_strided_slice %1 {offsets = [0, 7, 0], sizes = [4, 1, 8], strides = [1, 1, 1]} : vector<4x10x8xf32> to vector<4x1x8xf32>
    %34 = vector.broadcast %29 : vector<4x16x1xf32> to vector<4x16x8xf32>
    %35 = vector.broadcast %32 : vector<4x1x8xf32> to vector<4x16x8xf32>
    %36 = arith.minimumf %34, %35 : vector<4x16x8xf32>
    %37 = vector.broadcast %28 : vector<4x16x1xf32> to vector<4x16x8xf32>
    %38 = vector.broadcast %31 : vector<4x1x8xf32> to vector<4x16x8xf32>
    %39 = arith.maximumf %37, %38 : vector<4x16x8xf32>
    %40 = arith.subf %36, %39 : vector<4x16x8xf32>
    %cst_5 = arith.constant 0.000000e+00 : f32
    %41 = vector.broadcast %cst_5 : f32 to vector<4x16x8xf32>
    %42 = arith.maximumf %40, %41 : vector<4x16x8xf32>
    %43 = vector.broadcast %29 : vector<4x16x1xf32> to vector<4x16x8xf32>
    %44 = vector.broadcast %32 : vector<4x1x8xf32> to vector<4x16x8xf32>
    %45 = arith.maximumf %43, %44 : vector<4x16x8xf32>
    %46 = vector.broadcast %28 : vector<4x16x1xf32> to vector<4x16x8xf32>
    %47 = vector.broadcast %31 : vector<4x1x8xf32> to vector<4x16x8xf32>
    %48 = arith.minimumf %46, %47 : vector<4x16x8xf32>
    %49 = arith.subf %45, %48 : vector<4x16x8xf32>
    %50 = vector.broadcast %30 : vector<4x16x1xf32> to vector<4x16x8xf32>
    %51 = vector.broadcast %33 : vector<4x1x8xf32> to vector<4x16x8xf32>
    %52 = arith.subf %50, %51 : vector<4x16x8xf32>
    %53 = math.absf %52 : vector<4x16x8xf32>
    %54 = arith.mulf %16, %42 : vector<4x16x8xf32>
    %55 = arith.mulf %23, %49 : vector<4x16x8xf32>
    %56 = arith.addf %27, %53 : vector<4x16x8xf32>
    %57 = vector.extract_strided_slice %0 {offsets = [0, 0, 2], sizes = [4, 16, 1], strides = [1, 1, 1]} : vector<4x16x10xf32> to vector<4x16x1xf32>
    %58 = vector.extract_strided_slice %0 {offsets = [0, 0, 5], sizes = [4, 16, 1], strides = [1, 1, 1]} : vector<4x16x10xf32> to vector<4x16x1xf32>
    %59 = vector.extract_strided_slice %0 {offsets = [0, 0, 8], sizes = [4, 16, 1], strides = [1, 1, 1]} : vector<4x16x10xf32> to vector<4x16x1xf32>
    %60 = vector.extract_strided_slice %1 {offsets = [0, 2, 0], sizes = [4, 1, 8], strides = [1, 1, 1]} : vector<4x10x8xf32> to vector<4x1x8xf32>
    %61 = vector.extract_strided_slice %1 {offsets = [0, 5, 0], sizes = [4, 1, 8], strides = [1, 1, 1]} : vector<4x10x8xf32> to vector<4x1x8xf32>
    %62 = vector.extract_strided_slice %1 {offsets = [0, 8, 0], sizes = [4, 1, 8], strides = [1, 1, 1]} : vector<4x10x8xf32> to vector<4x1x8xf32>
    %63 = vector.broadcast %58 : vector<4x16x1xf32> to vector<4x16x8xf32>
    %64 = vector.broadcast %61 : vector<4x1x8xf32> to vector<4x16x8xf32>
    %65 = arith.minimumf %63, %64 : vector<4x16x8xf32>
    %66 = vector.broadcast %57 : vector<4x16x1xf32> to vector<4x16x8xf32>
    %67 = vector.broadcast %60 : vector<4x1x8xf32> to vector<4x16x8xf32>
    %68 = arith.maximumf %66, %67 : vector<4x16x8xf32>
    %69 = arith.subf %65, %68 : vector<4x16x8xf32>
    %cst_6 = arith.constant 0.000000e+00 : f32
    %70 = vector.broadcast %cst_6 : f32 to vector<4x16x8xf32>
    %71 = arith.maximumf %69, %70 : vector<4x16x8xf32>
    %72 = vector.broadcast %58 : vector<4x16x1xf32> to vector<4x16x8xf32>
    %73 = vector.broadcast %61 : vector<4x1x8xf32> to vector<4x16x8xf32>
    %74 = arith.maximumf %72, %73 : vector<4x16x8xf32>
    %75 = vector.broadcast %57 : vector<4x16x1xf32> to vector<4x16x8xf32>
    %76 = vector.broadcast %60 : vector<4x1x8xf32> to vector<4x16x8xf32>
    %77 = arith.minimumf %75, %76 : vector<4x16x8xf32>
    %78 = arith.subf %74, %77 : vector<4x16x8xf32>
    %79 = vector.broadcast %59 : vector<4x16x1xf32> to vector<4x16x8xf32>
    %80 = vector.broadcast %62 : vector<4x1x8xf32> to vector<4x16x8xf32>
    %81 = arith.subf %79, %80 : vector<4x16x8xf32>
    %82 = math.absf %81 : vector<4x16x8xf32>
    %83 = arith.mulf %54, %71 : vector<4x16x8xf32>
    %84 = arith.mulf %55, %78 : vector<4x16x8xf32>
    %85 = arith.addf %56, %82 : vector<4x16x8xf32>
    %86 = vector.extract_strided_slice %0 {offsets = [0, 0, 9], sizes = [4, 16, 1], strides = [1, 1, 1]} : vector<4x16x10xf32> to vector<4x16x1xf32>
    %87 = vector.extract_strided_slice %1 {offsets = [0, 9, 0], sizes = [4, 1, 8], strides = [1, 1, 1]} : vector<4x10x8xf32> to vector<4x1x8xf32>
    %88 = vector.broadcast %86 : vector<4x16x1xf32> to vector<4x16x8xf32>
    %89 = vector.broadcast %87 : vector<4x1x8xf32> to vector<4x16x8xf32>
    %90 = arith.addf %88, %89 : vector<4x16x8xf32>
    %91 = arith.subf %90, %83 : vector<4x16x8xf32>
    %cst_7 = arith.constant 9.99999993E-9 : f32
    %92 = vector.broadcast %cst_7 : f32 to vector<4x16x8xf32>
    %93 = arith.maximumf %91, %92 : vector<4x16x8xf32>
    %94 = arith.divf %83, %93 : vector<4x16x8xf32>
    %95 = arith.subf %84, %91 : vector<4x16x8xf32>
    %cst_8 = arith.constant 9.99999993E-9 : f32
    %96 = vector.broadcast %cst_8 : f32 to vector<4x16x8xf32>
    %97 = arith.maximumf %84, %96 : vector<4x16x8xf32>
    %98 = arith.divf %95, %97 : vector<4x16x8xf32>
    %99 = arith.subf %94, %98 : vector<4x16x8xf32>
    %100 = tpu.concatenate %85, %99 in 2 : vector<4x16x8xf32>, vector<4x16x8xf32> -> vector<4x16x16xf32>
    %c0_9 = arith.constant 0 : index
    %c0_10 = arith.constant 0 : index
    %c0_11 = arith.constant 0 : index
    %101 = vector.load %arg3[%c0_9, %c0_10, %c0_11] : memref<4x16x16xf32, #tpu.memory_space<vmem>>, vector<4x16x16xf32>
    tpu.vector_store %arg3[%c0_9, %c0_10, %c0_11], %100 {strides = array<i32>} : memref<4x16x16xf32, #tpu.memory_space<vmem>>, vector<4x16x16xf32>,
    return
  }
  func.func @transform_0(%arg0: i32) -> (i32, i32, i32) {
    %c0_i32 = arith.constant 0 : i32
    %c0_i32_0 = arith.constant 0 : i32
    %c0_i32_1 = arith.constant 0 : i32
    return %c0_i32, %arg0, %c0_i32_0 : i32, i32, i32
  }
  func.func @transform_1(%arg0: i32) -> (i32, i32, i32) {
    %c0_i32 = arith.constant 0 : i32
    %c0_i32_0 = arith.constant 0 : i32
    %c0_i32_1 = arith.constant 0 : i32
    %c0_i32_2 = arith.constant 0 : i32
    return %c0_i32, %c0_i32_0, %c0_i32_1 : i32, i32, i32
  }
  func.func @transform_2(%arg0: i32) -> (i32, i32, i32) {
    %c0_i32 = arith.constant 0 : i32
    %c0_i32_0 = arith.constant 0 : i32
    %c0_i32_1 = arith.constant 0 : i32
    return %c0_i32, %arg0, %c0_i32_0 : i32, i32, i32
  }
}

</mosaic_0001>

<llo_original>
// kernel: tpu_custom_call.1
$region0: #{tpu_custom_call.1}
  #allocation0 [shape = 'u32[]', space=smem, size = 0x4, offset = 0x4, fixed_abs, tag = 'smem constant byte address 0x4 - core index']
  #allocation1 [shape = 'u32[144,128]{1,0:T(1,128)}', space=vmem, size = 0x12000, scoped, tag = 'internal scratch']
  %s0 = inlined_call_operand.vmem [shape: f32[4,16,10], index: 0, kind: input, shape index: {}]
  %s1 = inlined_call_operand.vmem [shape: f32[4,10,8], index: 1, kind: input, shape index: {}]
  %s2 = inlined_call_operand.hbm [shape: f32[4,16,16], index: 2, kind: output, shape index: {}]
  %s3 = sld [smem:[#allocation0]]
  $region18: #{tpu_custom_call.1} parent=0
    _
  %s5 = ssub.s32 1, %s3
  %s6 = scalar_select 0, %s5, %s3
  $region1: #{tpu_custom_call.1} parent=0
    #allocation2 [shape = 'u8[32768]{0}', space=vmem, size = 0x8000, scoped, tag = 'output window, operand 0, single buffered']
    #allocation3 [shape = 's32[1]{0}', space=sflag, size = 0x4, scoped, tag = 'scoped memory for tpu_custom_call.1']
    %7 = vsyncpa [#allocation3], 0
    // Predicated region
    $region2: #{tpu_custom_call.1} parent=1 // pred_check
      _
    $region3: #{tpu_custom_call.1} parent=1 // pred_check_branch
      %9 = sbr.rel (0) target = $region5
    $region4: #{tpu_custom_call.1} parent=1 // pred_region
      _
    $region5: #{tpu_custom_call.1} parent=1 // pred_fallthru
      _
    // Predicated region
    $region6: #{tpu_custom_call.1} parent=1 // pred_check
      _
    $region7: #{tpu_custom_call.1} parent=1 // pred_check_branch
      %11 = sbr.rel (0) target = $region9
    $region8: #{tpu_custom_call.1} parent=1 // pred_region
      _
    $region9: #{tpu_custom_call.1} parent=1 // pred_fallthru
      _
    %v12 = vld [vmem:[%s0] sm:$0xff]
    %v13 = vld [vmem:[%s0 + $0x8] sm:$0xff]
    %v14 = vld [vmem:[%s0 + $0x10] sm:$0xff]
    %v15 = vld [vmem:[%s0 + $0x18] sm:$0xff]
    %v16 = vld [vmem:[%s0 + $0x20] sm:$0xff]
    %v17 = vld [vmem:[%s0 + $0x28] sm:$0xff]
    %v18 = vld [vmem:[%s0 + $0x30] sm:$0xff]
    %v19 = vld [vmem:[%s0 + $0x38] sm:$0xff]
    %v20 = vld [vmem:[%s1] sm:$0xff]
    %v21 = vld [vmem:[%s1 + $0x8] sm:$0x3]
    %v22 = vld [vmem:[%s1 + $0x10] sm:$0xff]
    %v23 = vld [vmem:[%s1 + $0x18] sm:$0x3]
    %v24 = vld [vmem:[%s1 + $0x20] sm:$0xff]
    %v25 = vld [vmem:[%s1 + $0x28] sm:$0x3]
    %v26 = vld [vmem:[%s1 + $0x30] sm:$0xff]
    %v27 = vld [vmem:[%s1 + $0x38] sm:$0x3]
    %29 = vset.pattern.permute.xlu0 3
    %30 = vperm.xlu0 %29, %v12
    %v31 = vpop.permute.xlu0 %30
    %34 = vset.pattern.permute.xlu0 3
    %35 = vperm.xlu0 %34, %v13
    %v36 = vpop.permute.xlu0 %35
    %39 = vset.pattern.permute.xlu0 3
    %40 = vperm.xlu0 %39, %v14
    %v41 = vpop.permute.xlu0 %40
    %44 = vset.pattern.permute.xlu0 3
    %45 = vperm.xlu0 %44, %v15
    %v46 = vpop.permute.xlu0 %45
    %49 = vset.pattern.permute.xlu0 3
    %50 = vperm.xlu0 %49, %v16
    %v51 = vpop.permute.xlu0 %50
    %54 = vset.pattern.permute.xlu0 3
    %55 = vperm.xlu0 %54, %v17
    %v56 = vpop.permute.xlu0 %55
    %59 = vset.pattern.permute.xlu0 3
    %60 = vperm.xlu0 %59, %v18
    %v61 = vpop.permute.xlu0 %60
    %64 = vset.pattern.permute.xlu0 3
    %65 = vperm.xlu0 %64, %v19
    %v66 = vpop.permute.xlu0 %65
    %v68 = vlaneseq
    %v69 = vshrl.u32 %v68, 7
    %v70 = vsub.s32 3, %v69
    %v71 = vrot.slane %v20, %v70
    %v72 = vlaneseq
    %v73 = vshrl.u32 %v72, 7
    %v74 = vsub.s32 3, %v73
    %v75 = vrot.slane %v22, %v74
    %v76 = vlaneseq
    %v77 = vshrl.u32 %v76, 7
    %v78 = vsub.s32 3, %v77
    %v79 = vrot.slane %v24, %v78
    %v80 = vlaneseq
    %v81 = vshrl.u32 %v80, 7
    %v82 = vsub.s32 3, %v81
    %v83 = vrot.slane %v26, %v82
    %v84 = vmin.f32 %v31, %v71
    %v85 = vmin.f32 %v36, %v71
    %v86 = vmin.f32 %v41, %v75
    %v87 = vmin.f32 %v46, %v75
    %v88 = vmin.f32 %v51, %v79
    %v89 = vmin.f32 %v56, %v79
    %v90 = vmin.f32 %v61, %v83
    %v91 = vmin.f32 %v66, %v83
    %92 = vset.pattern.permute.xlu0 0
    %93 = vperm.xlu0 %92, %v12
    %v94 = vpop.permute.xlu0 %93
    %96 = vset.pattern.permute.xlu0 0
    %97 = vperm.xlu0 %96, %v13
    %v98 = vpop.permute.xlu0 %97
    %100 = vset.pattern.permute.xlu0 0
    %101 = vperm.xlu0 %100, %v14
    %v102 = vpop.permute.xlu0 %101
    %104 = vset.pattern.permute.xlu0 0
    %105 = vperm.xlu0 %104, %v15
    %v106 = vpop.permute.xlu0 %105
    %108 = vset.pattern.permute.xlu0 0
    %109 = vperm.xlu0 %108, %v16
    %v110 = vpop.permute.xlu0 %109
    %112 = vset.pattern.permute.xlu0 0
    %113 = vperm.xlu0 %112, %v17
    %v114 = vpop.permute.xlu0 %113
    %116 = vset.pattern.permute.xlu0 0
    %117 = vperm.xlu0 %116, %v18
    %v118 = vpop.permute.xlu0 %117
    %120 = vset.pattern.permute.xlu0 0
    %121 = vperm.xlu0 %120, %v19
    %v122 = vpop.permute.xlu0 %121
    %v124 = vlaneseq
    %v125 = vshrl.u32 %v124, 7
    %v126 = vsub.s32 0, %v125
    %v127 = vrot.slane %v20, %v126
    %v128 = vlaneseq
    %v129 = vshrl.u32 %v128, 7
    %v130 = vsub.s32 0, %v129
    %v131 = vrot.slane %v22, %v130
    %v132 = vlaneseq
    %v133 = vshrl.u32 %v132, 7
    %v134 = vsub.s32 0, %v133
    %v135 = vrot.slane %v24, %v134
    %v136 = vlaneseq
    %v137 = vshrl.u32 %v136, 7
    %v138 = vsub.s32 0, %v137
    %v139 = vrot.slane %v26, %v138
    %v140 = vmax.f32 %v94, %v127
    %v141 = vmax.f32 %v98, %v127
    %v142 = vmax.f32 %v102, %v131
    %v143 = vmax.f32 %v106, %v131
    %v144 = vmax.f32 %v110, %v135
    %v145 = vmax.f32 %v114, %v135
    %v146 = vmax.f32 %v118, %v139
    %v147 = vmax.f32 %v122, %v139
    %v148 = vsub.f32 %v84, %v140
    %v149 = vsub.f32 %v85, %v141
    %v150 = vsub.f32 %v86, %v142
    %v151 = vsub.f32 %v87, %v143
    %v152 = vsub.f32 %v88, %v144
    %v153 = vsub.f32 %v89, %v145
    %v154 = vsub.f32 %v90, %v146
    %v155 = vsub.f32 %v91, %v147
    %v156 = vmax.f32 %v148, 0.0
    %v157 = vmax.f32 %v149, 0.0
    %v158 = vmax.f32 %v150, 0.0
    %v159 = vmax.f32 %v151, 0.0
    %v160 = vmax.f32 %v152, 0.0
    %v161 = vmax.f32 %v153, 0.0
    %v162 = vmax.f32 %v154, 0.0
    %v163 = vmax.f32 %v155, 0.0
    %v164 = vmax.f32 %v31, %v71
    %v165 = vmax.f32 %v36, %v71
    %v166 = vmax.f32 %v41, %v75
    %v167 = vmax.f32 %v46, %v75
    %v168 = vmax.f32 %v51, %v79
    %v169 = vmax.f32 %v56, %v79
    %v170 = vmax.f32 %v61, %v83
    %v171 = vmax.f32 %v66, %v83
    %v172 = vmin.f32 %v94, %v127
    %v173 = vmin.f32 %v98, %v127
    %v174 = vmin.f32 %v102, %v131
    %v175 = vmin.f32 %v106, %v131
    %v176 = vmin.f32 %v110, %v135
    %v177 = vmin.f32 %v114, %v135
    %v178 = vmin.f32 %v118, %v139
    %v179 = vmin.f32 %v122, %v139
    %v180 = vsub.f32 %v164, %v172
    %v181 = vsub.f32 %v165, %v173
    %v182 = vsub.f32 %v166, %v174
    %v183 = vsub.f32 %v167, %v175
    %v184 = vsub.f32 %v168, %v176
    %v185 = vsub.f32 %v169, %v177
    %v186 = vsub.f32 %v170, %v178
    %v187 = vsub.f32 %v171, %v179
    %188 = vset.pattern.permute.xlu0 6
    %189 = vperm.xlu0 %188, %v12
    %v190 = vpop.permute.xlu0 %189
    %192 = vset.pattern.permute.xlu0 6
    %193 = vperm.xlu0 %192, %v13
    %v194 = vpop.permute.xlu0 %193
    %196 = vset.pattern.permute.xlu0 6
    %197 = vperm.xlu0 %196, %v14
    %v198 = vpop.permute.xlu0 %197
    %200 = vset.pattern.permute.xlu0 6
    %201 = vperm.xlu0 %200, %v15
    %v202 = vpop.permute.xlu0 %201
    %204 = vset.pattern.permute.xlu0 6
    %205 = vperm.xlu0 %204, %v16
    %v206 = vpop.permute.xlu0 %205
    %208 = vset.pattern.permute.xlu0 6
    %209 = vperm.xlu0 %208, %v17
    %v210 = vpop.permute.xlu0 %209
    %212 = vset.pattern.permute.xlu0 6
    %213 = vperm.xlu0 %212, %v18
    %v214 = vpop.permute.xlu0 %213
    %216 = vset.pattern.permute.xlu0 6
    %217 = vperm.xlu0 %216, %v19
    %v218 = vpop.permute.xlu0 %217
    %v220 = vlaneseq
    %v221 = vshrl.u32 %v220, 7
    %v222 = vsub.s32 6, %v221
    %v223 = vrot.slane %v20, %v222
    %v224 = vlaneseq
    %v225 = vshrl.u32 %v224, 7
    %v226 = vsub.s32 6, %v225
    %v227 = vrot.slane %v22, %v226
    %v228 = vlaneseq
    %v229 = vshrl.u32 %v228, 7
    %v230 = vsub.s32 6, %v229
    %v231 = vrot.slane %v24, %v230
    %v232 = vlaneseq
    %v233 = vshrl.u32 %v232, 7
    %v234 = vsub.s32 6, %v233
    %v235 = vrot.slane %v26, %v234
    %v236 = vsub.f32 %v190, %v223
    %v237 = vsub.f32 %v194, %v223
    %v238 = vsub.f32 %v198, %v227
    %v239 = vsub.f32 %v202, %v227
    %v240 = vsub.f32 %v206, %v231
    %v241 = vsub.f32 %v210, %v231
    %v242 = vsub.f32 %v214, %v235
    %v243 = vsub.f32 %v218, %v235
    %v244 = vand.u32 2147483647, %v236
    %v245 = vand.u32 2147483647, %v237
    %v246 = vand.u32 2147483647, %v238
    %v247 = vand.u32 2147483647, %v239
    %v248 = vand.u32 2147483647, %v240
    %v249 = vand.u32 2147483647, %v241
    %v250 = vand.u32 2147483647, %v242
    %v251 = vand.u32 2147483647, %v243
    %252 = vset.pattern.permute.xlu0 4
    %253 = vperm.xlu0 %252, %v12
    %v254 = vpop.permute.xlu0 %253
    %256 = vset.pattern.permute.xlu0 4
    %257 = vperm.xlu0 %256, %v13
    %v258 = vpop.permute.xlu0 %257
    %260 = vset.pattern.permute.xlu0 4
    %261 = vperm.xlu0 %260, %v14
    %v262 = vpop.permute.xlu0 %261
    %264 = vset.pattern.permute.xlu0 4
    %265 = vperm.xlu0 %264, %v15
    %v266 = vpop.permute.xlu0 %265
    %268 = vset.pattern.permute.xlu0 4
    %269 = vperm.xlu0 %268, %v16
    %v270 = vpop.permute.xlu0 %269
    %272 = vset.pattern.permute.xlu0 4
    %273 = vperm.xlu0 %272, %v17
    %v274 = vpop.permute.xlu0 %273
    %276 = vset.pattern.permute.xlu0 4
    %277 = vperm.xlu0 %276, %v18
    %v278 = vpop.permute.xlu0 %277
    %280 = vset.pattern.permute.xlu0 4
    %281 = vperm.xlu0 %280, %v19
    %v282 = vpop.permute.xlu0 %281
    %v284 = vlaneseq
    %v285 = vshrl.u32 %v284, 7
    %v286 = vsub.s32 4, %v285
    %v287 = vrot.slane %v20, %v286
    %v288 = vlaneseq
    %v289 = vshrl.u32 %v288, 7
    %v290 = vsub.s32 4, %v289
    %v291 = vrot.slane %v22, %v290
    %v292 = vlaneseq
    %v293 = vshrl.u32 %v292, 7
    %v294 = vsub.s32 4, %v293
    %v295 = vrot.slane %v24, %v294
    %v296 = vlaneseq
    %v297 = vshrl.u32 %v296, 7
    %v298 = vsub.s32 4, %v297
    %v299 = vrot.slane %v26, %v298
    %v300 = vmin.f32 %v254, %v287
    %v301 = vmin.f32 %v258, %v287
    %v302 = vmin.f32 %v262, %v291
    %v303 = vmin.f32 %v266, %v291
    %v304 = vmin.f32 %v270, %v295
    %v305 = vmin.f32 %v274, %v295
    %v306 = vmin.f32 %v278, %v299
    %v307 = vmin.f32 %v282, %v299
    %308 = vset.pattern.permute.xlu0 1
    %309 = vperm.xlu0 %308, %v12
    %v310 = vpop.permute.xlu0 %309
    %312 = vset.pattern.permute.xlu0 1
    %313 = vperm.xlu0 %312, %v13
    %v314 = vpop.permute.xlu0 %313
    %316 = vset.pattern.permute.xlu0 1
    %317 = vperm.xlu0 %316, %v14
    %v318 = vpop.permute.xlu0 %317
    %320 = vset.pattern.permute.xlu0 1
    %321 = vperm.xlu0 %320, %v15
    %v322 = vpop.permute.xlu0 %321
    %324 = vset.pattern.permute.xlu0 1
    %325 = vperm.xlu0 %324, %v16
    %v326 = vpop.permute.xlu0 %325
    %328 = vset.pattern.permute.xlu0 1
    %329 = vperm.xlu0 %328, %v17
    %v330 = vpop.permute.xlu0 %329
    %332 = vset.pattern.permute.xlu0 1
    %333 = vperm.xlu0 %332, %v18
    %v334 = vpop.permute.xlu0 %333
    %336 = vset.pattern.permute.xlu0 1
    %337 = vperm.xlu0 %336, %v19
    %v338 = vpop.permute.xlu0 %337
    %v340 = vlaneseq
    %v341 = vshrl.u32 %v340, 7
    %v342 = vsub.s32 1, %v341
    %v343 = vrot.slane %v20, %v342
    %v344 = vlaneseq
    %v345 = vshrl.u32 %v344, 7
    %v346 = vsub.s32 1, %v345
    %v347 = vrot.slane %v22, %v346
    %v348 = vlaneseq
    %v349 = vshrl.u32 %v348, 7
    %v350 = vsub.s32 1, %v349
    %v351 = vrot.slane %v24, %v350
    %v352 = vlaneseq
    %v353 = vshrl.u32 %v352, 7
    %v354 = vsub.s32 1, %v353
    %v355 = vrot.slane %v26, %v354
    %v356 = vmax.f32 %v310, %v343
    %v357 = vmax.f32 %v314, %v343
    %v358 = vmax.f32 %v318, %v347
    %v359 = vmax.f32 %v322, %v347
    %v360 = vmax.f32 %v326, %v351
    %v361 = vmax.f32 %v330, %v351
    %v362 = vmax.f32 %v334, %v355
    %v363 = vmax.f32 %v338, %v355
    %v364 = vsub.f32 %v300, %v356
    %v365 = vsub.f32 %v301, %v357
    %v366 = vsub.f32 %v302, %v358
    %v367 = vsub.f32 %v303, %v359
    %v368 = vsub.f32 %v304, %v360
    %v369 = vsub.f32 %v305, %v361
    %v370 = vsub.f32 %v306, %v362
    %v371 = vsub.f32 %v307, %v363
    %v372 = vmax.f32 %v364, 0.0
    %v373 = vmax.f32 %v365, 0.0
    %v374 = vmax.f32 %v366, 0.0
    %v375 = vmax.f32 %v367, 0.0
    %v376 = vmax.f32 %v368, 0.0
    %v377 = vmax.f32 %v369, 0.0
    %v378 = vmax.f32 %v370, 0.0
    %v379 = vmax.f32 %v371, 0.0
    %v380 = vmax.f32 %v254, %v287
    %v381 = vmax.f32 %v258, %v287
    %v382 = vmax.f32 %v262, %v291
    %v383 = vmax.f32 %v266, %v291
    %v384 = vmax.f32 %v270, %v295
    %v385 = vmax.f32 %v274, %v295
    %v386 = vmax.f32 %v278, %v299
    %v387 = vmax.f32 %v282, %v299
    %v388 = vmin.f32 %v310, %v343
    %v389 = vmin.f32 %v314, %v343
    %v390 = vmin.f32 %v318, %v347
    %v391 = vmin.f32 %v322, %v347
    %v392 = vmin.f32 %v326, %v351
    %v393 = vmin.f32 %v330, %v351
    %v394 = vmin.f32 %v334, %v355
    %v395 = vmin.f32 %v338, %v355
    %v396 = vsub.f32 %v380, %v388
    %v397 = vsub.f32 %v381, %v389
    %v398 = vsub.f32 %v382, %v390
    %v399 = vsub.f32 %v383, %v391
    %v400 = vsub.f32 %v384, %v392
    %v401 = vsub.f32 %v385, %v393
    %v402 = vsub.f32 %v386, %v394
    %v403 = vsub.f32 %v387, %v395
    %404 = vset.pattern.permute.xlu0 7
    %405 = vperm.xlu0 %404, %v12
    %v406 = vpop.permute.xlu0 %405
    %408 = vset.pattern.permute.xlu0 7
    %409 = vperm.xlu0 %408, %v13
    %v410 = vpop.permute.xlu0 %409
    %412 = vset.pattern.permute.xlu0 7
    %413 = vperm.xlu0 %412, %v14
    %v414 = vpop.permute.xlu0 %413
    %416 = vset.pattern.permute.xlu0 7
    %417 = vperm.xlu0 %416, %v15
    %v418 = vpop.permute.xlu0 %417
    %420 = vset.pattern.permute.xlu0 7
    %421 = vperm.xlu0 %420, %v16
    %v422 = vpop.permute.xlu0 %421
    %424 = vset.pattern.permute.xlu0 7
    %425 = vperm.xlu0 %424, %v17
    %v426 = vpop.permute.xlu0 %425
    %428 = vset.pattern.permute.xlu0 7
    %429 = vperm.xlu0 %428, %v18
    %v430 = vpop.permute.xlu0 %429
    %432 = vset.pattern.permute.xlu0 7
    %433 = vperm.xlu0 %432, %v19
    %v434 = vpop.permute.xlu0 %433
    %v436 = vlaneseq
    %v437 = vshrl.u32 %v436, 7
    %v438 = vsub.s32 7, %v437
    %v439 = vrot.slane %v20, %v438
    %v440 = vlaneseq
    %v441 = vshrl.u32 %v440, 7
    %v442 = vsub.s32 7, %v441
    %v443 = vrot.slane %v22, %v442
    %v444 = vlaneseq
    %v445 = vshrl.u32 %v444, 7
    %v446 = vsub.s32 7, %v445
    %v447 = vrot.slane %v24, %v446
    %v448 = vlaneseq
    %v449 = vshrl.u32 %v448, 7
    %v450 = vsub.s32 7, %v449
    %v451 = vrot.slane %v26, %v450
    %v452 = vsub.f32 %v406, %v439
    %v453 = vsub.f32 %v410, %v439
    %v454 = vsub.f32 %v414, %v443
    %v455 = vsub.f32 %v418, %v443
    %v456 = vsub.f32 %v422, %v447
    %v457 = vsub.f32 %v426, %v447
    %v458 = vsub.f32 %v430, %v451
    %v459 = vsub.f32 %v434, %v451
    %v460 = vand.u32 2147483647, %v452
    %v461 = vand.u32 2147483647, %v453
    %v462 = vand.u32 2147483647, %v454
    %v463 = vand.u32 2147483647, %v455
    %v464 = vand.u32 2147483647, %v456
    %v465 = vand.u32 2147483647, %v457
    %v466 = vand.u32 2147483647, %v458
    %v467 = vand.u32 2147483647, %v459
    %v468 = vmul.f32 %v156, %v372
    %v469 = vmul.f32 %v157, %v373
    %v470 = vmul.f32 %v158, %v374
    %v471 = vmul.f32 %v159, %v375
    %v472 = vmul.f32 %v160, %v376
    %v473 = vmul.f32 %v161, %v377
    %v474 = vmul.f32 %v162, %v378
    %v475 = vmul.f32 %v163, %v379
    %v476 = vmul.f32 %v180, %v396
    %v477 = vmul.f32 %v181, %v397
    %v478 = vmul.f32 %v182, %v398
    %v479 = vmul.f32 %v183, %v399
    %v480 = vmul.f32 %v184, %v400
    %v481 = vmul.f32 %v185, %v401
    %v482 = vmul.f32 %v186, %v402
    %v483 = vmul.f32 %v187, %v403
    %v484 = vadd.f32 %v244, %v460
    %v485 = vadd.f32 %v245, %v461
    %v486 = vadd.f32 %v246, %v462
    %v487 = vadd.f32 %v247, %v463
    %v488 = vadd.f32 %v248, %v464
    %v489 = vadd.f32 %v249, %v465
    %v490 = vadd.f32 %v250, %v466
    %v491 = vadd.f32 %v251, %v467
    %492 = vset.pattern.permute.xlu0 5
    %493 = vperm.xlu0 %492, %v12
    %v494 = vpop.permute.xlu0 %493
    %496 = vset.pattern.permute.xlu0 5
    %497 = vperm.xlu0 %496, %v13
    %v498 = vpop.permute.xlu0 %497
    %500 = vset.pattern.permute.xlu0 5
    %501 = vperm.xlu0 %500, %v14
    %v502 = vpop.permute.xlu0 %501
    %504 = vset.pattern.permute.xlu0 5
    %505 = vperm.xlu0 %504, %v15
    %v506 = vpop.permute.xlu0 %505
    %508 = vset.pattern.permute.xlu0 5
    %509 = vperm.xlu0 %508, %v16
    %v510 = vpop.permute.xlu0 %509
    %512 = vset.pattern.permute.xlu0 5
    %513 = vperm.xlu0 %512, %v17
    %v514 = vpop.permute.xlu0 %513
    %516 = vset.pattern.permute.xlu0 5
    %517 = vperm.xlu0 %516, %v18
    %v518 = vpop.permute.xlu0 %517
    %520 = vset.pattern.permute.xlu0 5
    %521 = vperm.xlu0 %520, %v19
    %v522 = vpop.permute.xlu0 %521
    %v524 = vlaneseq
    %v525 = vshrl.u32 %v524, 7
    %v526 = vsub.s32 5, %v525
    %v527 = vrot.slane %v20, %v526
    %v528 = vlaneseq
    %v529 = vshrl.u32 %v528, 7
    %v530 = vsub.s32 5, %v529
    %v531 = vrot.slane %v22, %v530
    %v532 = vlaneseq
    %v533 = vshrl.u32 %v532, 7
    %v534 = vsub.s32 5, %v533
    %v535 = vrot.slane %v24, %v534
    %v536 = vlaneseq
    %v537 = vshrl.u32 %v536, 7
    %v538 = vsub.s32 5, %v537
    %v539 = vrot.slane %v26, %v538
    %v540 = vmin.f32 %v494, %v527
    %v541 = vmin.f32 %v498, %v527
    %v542 = vmin.f32 %v502, %v531
    %v543 = vmin.f32 %v506, %v531
    %v544 = vmin.f32 %v510, %v535
    %v545 = vmin.f32 %v514, %v535
    %v546 = vmin.f32 %v518, %v539
    %v547 = vmin.f32 %v522, %v539
    %548 = vset.pattern.permute.xlu0 2
    %549 = vperm.xlu0 %548, %v12
    %v550 = vpop.permute.xlu0 %549
    %552 = vset.pattern.permute.xlu0 2
    %553 = vperm.xlu0 %552, %v13
    %v554 = vpop.permute.xlu0 %553
    %556 = vset.pattern.permute.xlu0 2
    %557 = vperm.xlu0 %556, %v14
    %v558 = vpop.permute.xlu0 %557
    %560 = vset.pattern.permute.xlu0 2
    %561 = vperm.xlu0 %560, %v15
    %v562 = vpop.permute.xlu0 %561
    %564 = vset.pattern.permute.xlu0 2
    %565 = vperm.xlu0 %564, %v16
    %v566 = vpop.permute.xlu0 %565
    %568 = vset.pattern.permute.xlu0 2
    %569 = vperm.xlu0 %568, %v17
    %v570 = vpop.permute.xlu0 %569
    %572 = vset.pattern.permute.xlu0 2
    %573 = vperm.xlu0 %572, %v18
    %v574 = vpop.permute.xlu0 %573
    %576 = vset.pattern.permute.xlu0 2
    %577 = vperm.xlu0 %576, %v19
    %v578 = vpop.permute.xlu0 %577
    %v580 = vlaneseq
    %v581 = vshrl.u32 %v580, 7
    %v582 = vsub.s32 2, %v581
    %v583 = vrot.slane %v20, %v582
    %v584 = vlaneseq
    %v585 = vshrl.u32 %v584, 7
    %v586 = vsub.s32 2, %v585
    %v587 = vrot.slane %v22, %v586
    %v588 = vlaneseq
    %v589 = vshrl.u32 %v588, 7
    %v590 = vsub.s32 2, %v589
    %v591 = vrot.slane %v24, %v590
    %v592 = vlaneseq
    %v593 = vshrl.u32 %v592, 7
    %v594 = vsub.s32 2, %v593
    %v595 = vrot.slane %v26, %v594
    %v596 = vmax.f32 %v550, %v583
    %v597 = vmax.f32 %v554, %v583
    %v598 = vmax.f32 %v558, %v587
    %v599 = vmax.f32 %v562, %v587
    %v600 = vmax.f32 %v566, %v591
    %v601 = vmax.f32 %v570, %v591
    %v602 = vmax.f32 %v574, %v595
    %v603 = vmax.f32 %v578, %v595
    %v604 = vsub.f32 %v540, %v596
    %v605 = vsub.f32 %v541, %v597
    %v606 = vsub.f32 %v542, %v598
    %v607 = vsub.f32 %v543, %v599
    %v608 = vsub.f32 %v544, %v600
    %v609 = vsub.f32 %v545, %v601
    %v610 = vsub.f32 %v546, %v602
    %v611 = vsub.f32 %v547, %v603
    %v612 = vmax.f32 %v604, 0.0
    %v613 = vmax.f32 %v605, 0.0
    %v614 = vmax.f32 %v606, 0.0
    %v615 = vmax.f32 %v607, 0.0
    %v616 = vmax.f32 %v608, 0.0
    %v617 = vmax.f32 %v609, 0.0
    %v618 = vmax.f32 %v610, 0.0
    %v619 = vmax.f32 %v611, 0.0
    %v620 = vmax.f32 %v494, %v527
    %v621 = vmax.f32 %v498, %v527
    %v622 = vmax.f32 %v502, %v531
    %v623 = vmax.f32 %v506, %v531
    %v624 = vmax.f32 %v510, %v535
    %v625 = vmax.f32 %v514, %v535
    %v626 = vmax.f32 %v518, %v539
    %v627 = vmax.f32 %v522, %v539
    %v628 = vmin.f32 %v550, %v583
    %v629 = vmin.f32 %v554, %v583
    %v630 = vmin.f32 %v558, %v587
    %v631 = vmin.f32 %v562, %v587
    %v632 = vmin.f32 %v566, %v591
    %v633 = vmin.f32 %v570, %v591
    %v634 = vmin.f32 %v574, %v595
    %v635 = vmin.f32 %v578, %v595
    %v636 = vsub.f32 %v620, %v628
    %v637 = vsub.f32 %v621, %v629
    %v638 = vsub.f32 %v622, %v630
    %v639 = vsub.f32 %v623, %v631
    %v640 = vsub.f32 %v624, %v632
    %v641 = vsub.f32 %v625, %v633
    %v642 = vsub.f32 %v626, %v634
    %v643 = vsub.f32 %v627, %v635
    %644 = vset.pattern.permute.xlu0 8
    %645 = vperm.xlu0 %644, %v12
    %v646 = vpop.permute.xlu0 %645
    %648 = vset.pattern.permute.xlu0 8
    %649 = vperm.xlu0 %648, %v13
    %v650 = vpop.permute.xlu0 %649
    %652 = vset.pattern.permute.xlu0 8
    %653 = vperm.xlu0 %652, %v14
    %v654 = vpop.permute.xlu0 %653
    %656 = vset.pattern.permute.xlu0 8
    %657 = vperm.xlu0 %656, %v15
    %v658 = vpop.permute.xlu0 %657
    %660 = vset.pattern.permute.xlu0 8
    %661 = vperm.xlu0 %660, %v16
    %v662 = vpop.permute.xlu0 %661
    %664 = vset.pattern.permute.xlu0 8
    %665 = vperm.xlu0 %664, %v17
    %v666 = vpop.permute.xlu0 %665
    %668 = vset.pattern.permute.xlu0 8
    %669 = vperm.xlu0 %668, %v18
    %v670 = vpop.permute.xlu0 %669
    %672 = vset.pattern.permute.xlu0 8
    %673 = vperm.xlu0 %672, %v19
    %v674 = vpop.permute.xlu0 %673
    %v676 = vlaneseq
    %v677 = vshrl.u32 %v676, 7
    %v678 = vsub.s32 0, %v677
    %v679 = vrot.slane %v21, %v678
    %v680 = vlaneseq
    %v681 = vshrl.u32 %v680, 7
    %v682 = vsub.s32 0, %v681
    %v683 = vrot.slane %v23, %v682
    %v684 = vlaneseq
    %v685 = vshrl.u32 %v684, 7
    %v686 = vsub.s32 0, %v685
    %v687 = vrot.slane %v25, %v686
    %v688 = vlaneseq
    %v689 = vshrl.u32 %v688, 7
    %v690 = vsub.s32 0, %v689
    %v691 = vrot.slane %v27, %v690
    %v692 = vsub.f32 %v646, %v679
    %v693 = vsub.f32 %v650, %v679
    %v694 = vsub.f32 %v654, %v683
    %v695 = vsub.f32 %v658, %v683
    %v696 = vsub.f32 %v662, %v687
    %v697 = vsub.f32 %v666, %v687
    %v698 = vsub.f32 %v670, %v691
    %v699 = vsub.f32 %v674, %v691
    %v700 = vand.u32 2147483647, %v692
    %v701 = vand.u32 2147483647, %v693
    %v702 = vand.u32 2147483647, %v694
    %v703 = vand.u32 2147483647, %v695
    %v704 = vand.u32 2147483647, %v696
    %v705 = vand.u32 2147483647, %v697
    %v706 = vand.u32 2147483647, %v698
    %v707 = vand.u32 2147483647, %v699
    %v708 = vmul.f32 %v468, %v612
    %v709 = vmul.f32 %v469, %v613
    %v710 = vmul.f32 %v470, %v614
    %v711 = vmul.f32 %v471, %v615
    %v712 = vmul.f32 %v472, %v616
    %v713 = vmul.f32 %v473, %v617
    %v714 = vmul.f32 %v474, %v618
    %v715 = vmul.f32 %v475, %v619
    %v716 = vmul.f32 %v476, %v636
    %v717 = vmul.f32 %v477, %v637
    %v718 = vmul.f32 %v478, %v638
    %v719 = vmul.f32 %v479, %v639
    %v720 = vmul.f32 %v480, %v640
    %v721 = vmul.f32 %v481, %v641
    %v722 = vmul.f32 %v482, %v642
    %v723 = vmul.f32 %v483, %v643
    %v724 = vadd.f32 %v484, %v700
    %v725 = vadd.f32 %v485, %v701
    %v726 = vadd.f32 %v486, %v702
    %v727 = vadd.f32 %v487, %v703
    %v728 = vadd.f32 %v488, %v704
    %v729 = vadd.f32 %v489, %v705
    %v730 = vadd.f32 %v490, %v706
    %v731 = vadd.f32 %v491, %v707
    %732 = vset.pattern.permute.xlu0 9
    %733 = vperm.xlu0 %732, %v12
    %v734 = vpop.permute.xlu0 %733
    %736 = vset.pattern.permute.xlu0 9
    %737 = vperm.xlu0 %736, %v13
    %v738 = vpop.permute.xlu0 %737
    %740 = vset.pattern.permute.xlu0 9
    %741 = vperm.xlu0 %740, %v14
    %v742 = vpop.permute.xlu0 %741
    %744 = vset.pattern.permute.xlu0 9
    %745 = vperm.xlu0 %744, %v15
    %v746 = vpop.permute.xlu0 %745
    %748 = vset.pattern.permute.xlu0 9
    %749 = vperm.xlu0 %748, %v16
    %v750 = vpop.permute.xlu0 %749
    %752 = vset.pattern.permute.xlu0 9
    %753 = vperm.xlu0 %752, %v17
    %v754 = vpop.permute.xlu0 %753
    %756 = vset.pattern.permute.xlu0 9
    %757 = vperm.xlu0 %756, %v18
    %v758 = vpop.permute.xlu0 %757
    %760 = vset.pattern.permute.xlu0 9
    %761 = vperm.xlu0 %760, %v19
    %v762 = vpop.permute.xlu0 %761
    %v764 = vlaneseq
    %v765 = vshrl.u32 %v764, 7
    %v766 = vsub.s32 1, %v765
    %v767 = vrot.slane %v21, %v766
    %v768 = vlaneseq
    %v769 = vshrl.u32 %v768, 7
    %v770 = vsub.s32 1, %v769
    %v771 = vrot.slane %v23, %v770
    %v772 = vlaneseq
    %v773 = vshrl.u32 %v772, 7
    %v774 = vsub.s32 1, %v773
    %v775 = vrot.slane %v25, %v774
    %v776 = vlaneseq
    %v777 = vshrl.u32 %v776, 7
    %v778 = vsub.s32 1, %v777
    %v779 = vrot.slane %v27, %v778
    %v780 = vadd.f32 %v734, %v767
    %v781 = vadd.f32 %v738, %v767
    %v782 = vadd.f32 %v742, %v771
    %v783 = vadd.f32 %v746, %v771
    %v784 = vadd.f32 %v750, %v775
    %v785 = vadd.f32 %v754, %v775
    %v786 = vadd.f32 %v758, %v779
    %v787 = vadd.f32 %v762, %v779
    %v788 = vsub.f32 %v780, %v708
    %v789 = vsub.f32 %v781, %v709
    %v790 = vsub.f32 %v782, %v710
    %v791 = vsub.f32 %v783, %v711
    %v792 = vsub.f32 %v784, %v712
    %v793 = vsub.f32 %v785, %v713
    %v794 = vsub.f32 %v786, %v714
    %v795 = vsub.f32 %v787, %v715
    %v796 = vmax.f32 %v788, 1e-08
    %v797 = vmax.f32 %v789, 1e-08
    %v798 = vmax.f32 %v790, 1e-08
    %v799 = vmax.f32 %v791, 1e-08
    %v800 = vmax.f32 %v792, 1e-08
    %v801 = vmax.f32 %v793, 1e-08
    %v802 = vmax.f32 %v794, 1e-08
    %v803 = vmax.f32 %v795, 1e-08
    %v804 = vrcp.pop %v796
    %v805 = vmul.f32 %v708, %v804
    %v806 = vrcp.pop %v797
    %v807 = vmul.f32 %v709, %v806
    %v808 = vrcp.pop %v798
    %v809 = vmul.f32 %v710, %v808
    %v810 = vrcp.pop %v799
    %v811 = vmul.f32 %v711, %v810
    %v812 = vrcp.pop %v800
    %v813 = vmul.f32 %v712, %v812
    %v814 = vrcp.pop %v801
    %v815 = vmul.f32 %v713, %v814
    %v816 = vrcp.pop %v802
    %v817 = vmul.f32 %v714, %v816
    %v818 = vrcp.pop %v803
    %v819 = vmul.f32 %v715, %v818
    %v820 = vsub.f32 %v716, %v788
    %v821 = vsub.f32 %v717, %v789
    %v822 = vsub.f32 %v718, %v790
    %v823 = vsub.f32 %v719, %v791
    %v824 = vsub.f32 %v720, %v792
    %v825 = vsub.f32 %v721, %v793
    %v826 = vsub.f32 %v722, %v794
    %v827 = vsub.f32 %v723, %v795
    %v828 = vmax.f32 %v716, 1e-08
    %v829 = vmax.f32 %v717, 1e-08
    %v830 = vmax.f32 %v718, 1e-08
    %v831 = vmax.f32 %v719, 1e-08
    %v832 = vmax.f32 %v720, 1e-08
    %v833 = vmax.f32 %v721, 1e-08
    %v834 = vmax.f32 %v722, 1e-08
    %v835 = vmax.f32 %v723, 1e-08
    %v836 = vrcp.pop %v828
    %v837 = vmul.f32 %v820, %v836
    %v838 = vrcp.pop %v829
    %v839 = vmul.f32 %v821, %v838
    %v840 = vrcp.pop %v830
    %v841 = vmul.f32 %v822, %v840
    %v842 = vrcp.pop %v831
    %v843 = vmul.f32 %v823, %v842
    %v844 = vrcp.pop %v832
    %v845 = vmul.f32 %v824, %v844
    %v846 = vrcp.pop %v833
    %v847 = vmul.f32 %v825, %v846
    %v848 = vrcp.pop %v834
    %v849 = vmul.f32 %v826, %v848
    %v850 = vrcp.pop %v835
    %v851 = vmul.f32 %v827, %v850
    %v852 = vsub.f32 %v805, %v837
    %v853 = vsub.f32 %v807, %v839
    %v854 = vsub.f32 %v809, %v841
    %v855 = vsub.f32 %v811, %v843
    %v856 = vsub.f32 %v813, %v845
    %v857 = vsub.f32 %v815, %v847
    %v858 = vsub.f32 %v817, %v849
    %v859 = vsub.f32 %v819, %v851
    %868 = vrot.lane.b32.xlu0 %v852, 8
    %v869 = vpop.permute.xlu0 %868
    %870 = vrot.lane.b32.xlu0 %v853, 8
    %v871 = vpop.permute.xlu0 %870
    %872 = vrot.lane.b32.xlu0 %v854, 8
    %v873 = vpop.permute.xlu0 %872
    %874 = vrot.lane.b32.xlu0 %v855, 8
    %v875 = vpop.permute.xlu0 %874
    %876 = vrot.lane.b32.xlu0 %v856, 8
    %v877 = vpop.permute.xlu0 %876
    %878 = vrot.lane.b32.xlu0 %v857, 8
    %v879 = vpop.permute.xlu0 %878
    %880 = vrot.lane.b32.xlu0 %v858, 8
    %v881 = vpop.permute.xlu0 %880
    %882 = vrot.lane.b32.xlu0 %v859, 8
    %v883 = vpop.permute.xlu0 %882
    %vm892 = vcmask 64512
    %v893 = vsel %vm892, %v724, %v869
    %v894 = vsel %vm892, %v725, %v871
    %v895 = vsel %vm892, %v726, %v873
    %v896 = vsel %vm892, %v727, %v875
    %v897 = vsel %vm892, %v728, %v877
    %v898 = vsel %vm892, %v729, %v879
    %v899 = vsel %vm892, %v730, %v881
    %v900 = vsel %vm892, %v731, %v883
    %vm901 = vcmask 130048
    %902 = vst.msk [vmem:[#allocation2] sm:$0xff] %vm901, %v893
    %903 = vst.msk [vmem:[#allocation2 + $0x8] sm:$0xff] %vm901, %v894
    %904 = vst.msk [vmem:[#allocation2 + $0x10] sm:$0xff] %vm901, %v895
    %905 = vst.msk [vmem:[#allocation2 + $0x18] sm:$0xff] %vm901, %v896
    %906 = vst.msk [vmem:[#allocation2 + $0x20] sm:$0xff] %vm901, %v897
    %907 = vst.msk [vmem:[#allocation2 + $0x28] sm:$0xff] %vm901, %v898
    %908 = vst.msk [vmem:[#allocation2 + $0x30] sm:$0xff] %vm901, %v899
    %909 = vst.msk [vmem:[#allocation2 + $0x38] sm:$0xff] %vm901, %v900
    // Predicated region
    $region10: #{tpu_custom_call.1} parent=1 // pred_check
      _
    $region11: #{tpu_custom_call.1} parent=1 // pred_check_branch
      %911 = sbr.rel (0) target = $region13
    $region12: #{tpu_custom_call.1} parent=1 // pred_region
      %s913 = ssub.s32 1024, 1024
      %914 = vsyncadd [#allocation3], %s913
      %s915 = sshll.u32 [#allocation2], 4
      %s916 = int_to_ptr.vmem [resolvable:$true] %s915
      %921 = dma.vmem_to_hbm [thread:$0]  %s916, 1024, %s2, [#allocation3], 128, 128, 8
    $region13: #{tpu_custom_call.1} parent=1 // pred_fallthru
      _
    // Predicated region
    $region14: #{tpu_custom_call.1} parent=1 // pred_check
      _
    $region15: #{tpu_custom_call.1} parent=1 // pred_check_branch
      %923 = sbr.rel (0) target = $region17
    $region16: #{tpu_custom_call.1} parent=1 // pred_region
      %924 = dma.done [#allocation3], 1024
    $region17: #{tpu_custom_call.1} parent=1 // pred_fallthru
      _
    %925 = vsyncpa [#allocation3], 1

</llo_original>
